<compile_context>
chip_gen: v7x
topology: tpu7x:2x2x1
jax: 0.10.0
libtpu: 0.0.40
codegen_flags: <defaults>
</compile_context>

<pallas_src>
import math
import jax
import jax.numpy as jnp
from jax import lax
from jax.experimental import pallas as pl
from jax.experimental.pallas import tpu as pltpu


def _single_buffered(block_shape, index_map):
    """BlockSpec for (quasi-)block-invariant weights: double-buffering buys no
    pipeline overlap but doubles VMEM residency, so request a single buffer.
    Falls back to the default pipelining if this jax build rejects it."""
    try:
        return pl.BlockSpec(block_shape, index_map, pipeline_mode=pl.Buffered(1))
    except (AttributeError, TypeError, ValueError):
        return pl.BlockSpec(block_shape, index_map)


# ---------------------------------------------------------------------------
# Kernel 1: QKV projection, head-major output (grid: head-group x B x q-tiles)
# ---------------------------------------------------------------------------
def make_qkv_proj_kernel(HG, HD):
    def kernel(x_ref, w_ref, q_ref, k_ref, v_ref):
        x = x_ref[0]                                       # (TQ, C) bf16
        # Small static unroll over heads in the group; each dot is full-depth
        # (contraction K = C) on the MXU with f32 accumulation.
        for h in range(HG):
            y = jnp.dot(x, w_ref[h],
                        preferred_element_type=jnp.float32)  # (TQ, 3*HD)
            q_ref[0, h] = y[:, :HD].astype(q_ref.dtype)
            k_ref[0, h] = y[:, HD:2 * HD].astype(k_ref.dtype)
            v_ref[0, h] = y[:, 2 * HD:].astype(v_ref.dtype)
    return kernel


# ---------------------------------------------------------------------------
# Kernel 2: flash attention (online softmax over K/V tiles) + fused c_proj
# ---------------------------------------------------------------------------
def make_flash_attn_kernel(H, TQ, TK, HD):
    def kernel(q_ref, k_ref, v_ref, wproj_ref, o_ref, m_sc, l_sc, acc_sc):
        qi = pl.program_id(1)
        ki = pl.program_id(2)

        @pl.when(ki == 0)
        def _():
            m_sc[...] = jnp.full(m_sc.shape, -jnp.inf, m_sc.dtype)
            l_sc[...] = jnp.zeros(l_sc.shape, l_sc.dtype)
            acc_sc[...] = jnp.zeros(acc_sc.shape, acc_sc.dtype)

        q_start = qi * TQ
        k_start = ki * TK

        def tile_update(apply_mask):
            q = q_ref[0]                                   # (H, TQ, HD) bf16
            k = k_ref[0]                                   # (H, TK, HD) bf16
            v = v_ref[0]                                   # (H, TK, HD) bf16
            # Head-batched QK^T, contracting on HD (no explicit transpose).
            # The 1/sqrt(HD) scale is already folded into Wqkv's Q columns.
            s = jnp.einsum("hqd,hkd->hqk", q, k,
                           preferred_element_type=jnp.float32)
            if apply_mask:
                # Tile-local causal mask (TQ, TK) — only on straddling tiles.
                rows = q_start + lax.broadcasted_iota(jnp.int32, (TQ, TK), 0)
                cols = k_start + lax.broadcasted_iota(jnp.int32, (TQ, TK), 1)
                s = jnp.where((cols <= rows)[None, :, :], s, -1e30)
            m_prev = m_sc[...]
            m_new = jnp.maximum(m_prev, jnp.max(s, axis=-1, keepdims=True))
            alpha = jnp.exp(m_prev - m_new)
            p = jnp.exp(s - m_new)                         # (H, TQ, TK) f32
            l_sc[...] = alpha * l_sc[...] + jnp.sum(p, axis=-1, keepdims=True)
            acc_sc[...] = alpha * acc_sc[...] + jnp.einsum(
                "hqk,hkd->hqd", p.astype(jnp.bfloat16), v,
                preferred_element_type=jnp.float32)
            m_sc[...] = m_new

        # Diagonal-straddling K/V tiles: need the causal mask.
        @pl.when((k_start <= q_start + (TQ - 1)) &
                 (k_start + (TK - 1) > q_start))
        def _():
            tile_update(True)

        # Fully-below-diagonal tiles: skip the iota + select filler entirely.
        @pl.when(k_start + (TK - 1) <= q_start)
        def _():
            tile_update(False)

        # Above-diagonal tiles: neither branch runs; their K/V DMA is elided by
        # the clamped index_map in the wrapper.

        @pl.when(ki == pl.num_programs(2) - 1)
        def _():
            # approx reciprocal -> EUP slot (~2^-12 rel err, within tolerance).
            inv_l = pl.reciprocal(l_sc[...], approx=True)
            attn = (acc_sc[...] * inv_l).astype(jnp.bfloat16)   # (H, TQ, HD)
            # Single MXU-dense c_proj: merge heads once, contraction K = C.
            attn2d = jnp.transpose(attn, (1, 0, 2)).reshape(TQ, H * HD)
            o_ref[0] = jnp.dot(attn2d, wproj_ref[...],
                               preferred_element_type=jnp.float32
                               ).astype(o_ref.dtype)
    return kernel


# ---------------------------------------------------------------------------
# Wrapper
# ---------------------------------------------------------------------------
def multi_head_attention(x, wqkv, wproj, n_heads, *, block_q=128, block_k=256,
                         weight_block_bytes=16 << 20,
                         vmem_limit_bytes=64 << 20):
    """Causal MHA forward.  x: (B, T, C) f32.  wqkv: (C, 3C).  wproj: (C, C).

    Generation notes: v5e -> block_k=128 (128-deep MXU) and modest VMEM limit;
    v6e -> block_k=256; v7x -> block_k=256 but re-derive the tile budget
    against its 64 MiB physical VMEM (keep vmem_limit_bytes <= ~48 MiB).
    """
    B, T, C = x.shape
    H = n_heads
    assert C % H == 0
    HD = C // H
    TQ = min(block_q, T)
    TK = min(block_k, T)
    assert T % TQ == 0 and T % TK == 0
    # NOTE: for realistic models pick C, HD as multiples of 128 and TQ/TK as
    # multiples of 8 so MXU operands and stores stay lane-dense.

    # ---- host-side weight prep (trace-time, one-off) ----
    scale = 1.0 / math.sqrt(HD)
    # Fold the softmax scale into the Q columns of Wqkv (frees a VPU pass over
    # every (H, TQ, TK) score tile in the kernel).
    wqkv_s = wqkv.at[:, :C].multiply(scale)
    # Regroup columns per head: (C, 3C) -> (H, C, 3*HD) with per-head column
    # order [q | k | v], so kernel 1 can emit head-major Q/K/V directly.
    w_heads = (wqkv_s.reshape(C, 3, H, HD).transpose(2, 0, 1, 3)
               .reshape(H, C, 3 * HD).astype(jnp.bfloat16))
    wproj_bf = wproj.astype(jnp.bfloat16)           # natural (C, C) layout
    x_bf = x.astype(jnp.bfloat16)                   # halve x HBM->VMEM DMA

    # Head-group size: largest divisor of H whose (HG, C, 3*HD) weight block
    # fits the budget (single-buffered).  Tiling the N=3C dim over head groups
    # bounds weight VMEM independently of C; x is re-streamed H//HG times.
    per_head_bytes = C * 3 * HD * 2
    HG = max(1, min(H, weight_block_bytes // per_head_bytes))
    while H % HG:
        HG -= 1
    n_groups = H // HG

    # ---- kernel 1: QKV projection, head-major outputs ----
    qkv_shape = jax.ShapeDtypeStruct((B, H, T, HD), jnp.bfloat16)
    q, k, v = pl.pallas_call(
        make_qkv_proj_kernel(HG, HD),
        out_shape=(qkv_shape, qkv_shape, qkv_shape),
        grid_spec=pltpu.PrefetchScalarGridSpec(
            num_scalar_prefetch=0,
            # head-group axis outermost: the weight block index changes slowest
            # so each weight block is fetched exactly once.
            grid=(n_groups, B, T // TQ),
            in_specs=[
                pl.BlockSpec((1, TQ, C), lambda n, b, i: (b, i, 0)),
                _single_buffered((HG, C, 3 * HD), lambda n, b, i: (n, 0, 0)),
            ],
            out_specs=[
                pl.BlockSpec((1, HG, TQ, HD), lambda n, b, i: (b, n, i, 0)),
                pl.BlockSpec((1, HG, TQ, HD), lambda n, b, i: (b, n, i, 0)),
                pl.BlockSpec((1, HG, TQ, HD), lambda n, b, i: (b, n, i, 0)),
            ],
        ),
        compiler_params=pltpu.CompilerParams(
            dimension_semantics=("parallel", "parallel", "parallel"),
            vmem_limit_bytes=vmem_limit_bytes),
    )(x_bf, w_heads)

    # ---- kernel 2: flash attention + fused output projection ----
    def kv_index(b, i, j):
        # Clamp to the last K/V tile on/below the causal diagonal: skipped
        # (above-diagonal) grid steps repeat the previous block index, so
        # Pallas elides their HBM->VMEM copies (~2x less K/V traffic).
        limit = ((i + 1) * TQ - 1) // TK
        return (b, 0, jnp.minimum(j, limit), 0)

    out = pl.pallas_call(
        make_flash_attn_kernel(H, TQ, TK, HD),
        out_shape=jax.ShapeDtypeStruct((B, T, C), x.dtype),
        grid_spec=pltpu.PrefetchScalarGridSpec(
            num_scalar_prefetch=0,
            grid=(B, T // TQ, T // TK),
            in_specs=[
                pl.BlockSpec((1, H, TQ, HD), lambda b, i, j: (b, 0, i, 0)),  # Q
                pl.BlockSpec((1, H, TK, HD), kv_index),                      # K
                pl.BlockSpec((1, H, TK, HD), kv_index),                      # V
                # Block-invariant c_proj weight, single-buffered.
                # TODO(synk): for very large C on v7x (64 MiB VMEM) tile c_proj
                # over its output dim or un-fuse it into a third matmul kernel.
                _single_buffered((C, C), lambda b, i, j: (0, 0)),
            ],
            out_specs=pl.BlockSpec((1, TQ, C), lambda b, i, j: (b, i, 0)),
            scratch_shapes=[
                pltpu.VMEM((H, TQ, 1), jnp.float32),    # running max  m
                pltpu.VMEM((H, TQ, 1), jnp.float32),    # running sum  l
                pltpu.VMEM((H, TQ, HD), jnp.float32),   # output accumulator
            ],
        ),
        compiler_params=pltpu.CompilerParams(
            dimension_semantics=("parallel", "parallel", "arbitrary"),
            vmem_limit_bytes=vmem_limit_bytes),
    )(q, k, v, wproj_bf)
    # TODO(synk): attention / resid dropout omitted (identity, p=0 inference).
    return out


# ---------------------------------------------------------------------------
# Pure-JAX reference (f32), mirroring the PyTorch module
# ---------------------------------------------------------------------------
def reference_mha(x, wqkv, wproj, n_heads):
    B, T, C = x.shape
    HD = C // n_heads
    qkv = x @ wqkv
    q, k, v = jnp.split(qkv, 3, axis=-1)
    q = q.reshape(B, T, n_heads, HD).transpose(0, 2, 1, 3)
    k = k.reshape(B, T, n_heads, HD).transpose(0, 2, 1, 3)
    v = v.reshape(B, T, n_heads, HD).transpose(0, 2, 1, 3)
    s = jnp.einsum("bhqd,bhkd->bhqk", q, k) / math.sqrt(HD)
    mask = jnp.tril(jnp.ones((T, T), dtype=bool))
    s = jnp.where(mask, s, -1e30)
    p = jax.nn.softmax(s, axis=-1)
    o = jnp.einsum("bhqk,bhkd->bhqd", p, v).transpose(0, 2, 1, 3).reshape(B, T, C)
    return o @ wproj


if __name__ == "__main__":
    B, T, C, H = 2, 32, 32, 4
    key = jax.random.PRNGKey(0)
    kx, k1, k2 = jax.random.split(key, 3)

    x = jax.random.normal(kx, (B, T, C), dtype=jnp.float32)

    def init_linear(k, fan_in, fan_out):
        bound = 1.0 / math.sqrt(fan_in)
        return jax.random.uniform(k, (fan_in, fan_out), jnp.float32, -bound, bound)

    wqkv = init_linear(k1, C, 3 * C)
    wproj = init_linear(k2, C, C)

    # Small blocks so the smoke test exercises the multi-tile flash path
    # (online softmax across K/V tiles, causal DMA clamp, straddle vs interior
    # mask branches) rather than a single degenerate tile.
    out = multi_head_attention(x, wqkv, wproj, H, block_q=8, block_k=8)
    out = jax.block_until_ready(out)

    ref = reference_mha(x, wqkv, wproj, H)
    assert out.shape == (B, T, C)
    max_err = float(jnp.max(jnp.abs(out - ref)))
    # bf16 MXU operands with f32 accumulation -> loosened tolerance vs f32 ref.
    assert jnp.allclose(out, ref, atol=3e-2, rtol=3e-2), (
        f"mismatch vs reference, max abs err {max_err}")

    print("KERNEL_OK")
</pallas_src>

<mosaic_0001>
module attributes {stable_mosaic.version = 11 : i64} {
  func.func @kernel(%arg0: i32, %arg1: i32, %arg2: i32, %arg3: memref<1x8x32xbf16, #tpu.memory_space<vmem>>, %arg4: memref<4x32x24xbf16, #tpu.memory_space<vmem>>, %arg5: memref<1x4x8x8xbf16, #tpu.memory_space<vmem>>, %arg6: memref<1x4x8x8xbf16, #tpu.memory_space<vmem>>, %arg7: memref<1x4x8x8xbf16, #tpu.memory_space<vmem>>) attributes {dimension_semantics = [#tpu.dimension_semantics<parallel>, #tpu.dimension_semantics<parallel>, #tpu.dimension_semantics<parallel>], iteration_bounds = array<i64: 1, 2, 4>, scalar_prefetch = 0 : i64, scratch_operands = 0 : i64, tpu.core_type = #tpu.core_type<tc>, window_params = [{transform_indices = @transform_0, window_bounds = array<i64: 1, 8, 32>}, {pipeline_mode = #tpu.pipeline_mode<synchronous>, transform_indices = @transform_1, window_bounds = array<i64: 4, 32, 24>}, {transform_indices = @transform_2, window_bounds = array<i64: 1, 4, 8, 8>}, {transform_indices = @transform_3, window_bounds = array<i64: 1, 4, 8, 8>}, {transform_indices = @transform_4, window_bounds = array<i64: 1, 4, 8, 8>}]} {
    %c0 = arith.constant 0 : index
    %c0_0 = arith.constant 0 : index
    %c0_1 = arith.constant 0 : index
    %0 = vector.load %arg3[%c0, %c0_0, %c0_1] : memref<1x8x32xbf16, #tpu.memory_space<vmem>>, vector<1x8x32xbf16>
    %1 = vector.shape_cast %0 : vector<1x8x32xbf16> to vector<8x32xbf16>
    %c0_2 = arith.constant 0 : index
    %c0_3 = arith.constant 0 : index
    %c0_4 = arith.constant 0 : index
    %2 = vector.load %arg4[%c0_2, %c0_3, %c0_4] : memref<4x32x24xbf16, #tpu.memory_space<vmem>>, vector<1x32x24xbf16>
    %3 = vector.shape_cast %2 : vector<1x32x24xbf16> to vector<32x24xbf16>
    %cst = arith.constant dense<0.000000e+00> : vector<8x24xf32>
    %4 = tpu.matmul %1, %3, %cst {dimension_numbers = #tpu.dot_dimension_numbers<[1], [0], [0], [1], [0, 0, 1, 1], [], []>} : vector<8x32xbf16>, vector<32x24xbf16>, vector<8x24xf32> -> vector<8x24xf32>
    %5 = vector.extract_strided_slice %4 {offsets = [0, 0], sizes = [8, 8], strides = [1, 1]} : vector<8x24xf32> to vector<8x8xf32>
    %6 = arith.truncf %5 : vector<8x8xf32> to vector<8x8xbf16>
    %c0_5 = arith.constant 0 : index
    %c0_6 = arith.constant 0 : index
    %c0_7 = arith.constant 0 : index
    %c0_8 = arith.constant 0 : index
    %7 = vector.load %arg5[%c0_5, %c0_6, %c0_7, %c0_8] : memref<1x4x8x8xbf16, #tpu.memory_space<vmem>>, vector<1x1x8x8xbf16>
    %8 = vector.shape_cast %7 : vector<1x1x8x8xbf16> to vector<8x8xbf16>
    %9 = vector.shape_cast %6 : vector<8x8xbf16> to vector<1x1x8x8xbf16>
    tpu.vector_store %arg5[%c0_5, %c0_6, %c0_7, %c0_8], %9 {strides = array<i32>} : memref<1x4x8x8xbf16, #tpu.memory_space<vmem>>, vector<1x1x8x8xbf16>,
    %10 = vector.extract_strided_slice %4 {offsets = [0, 8], sizes = [8, 8], strides = [1, 1]} : vector<8x24xf32> to vector<8x8xf32>
    %11 = arith.truncf %10 : vector<8x8xf32> to vector<8x8xbf16>
    %c0_9 = arith.constant 0 : index
    %c0_10 = arith.constant 0 : index
    %c0_11 = arith.constant 0 : index
    %c0_12 = arith.constant 0 : index
    %12 = vector.load %arg6[%c0_9, %c0_10, %c0_11, %c0_12] : memref<1x4x8x8xbf16, #tpu.memory_space<vmem>>, vector<1x1x8x8xbf16>
    %13 = vector.shape_cast %12 : vector<1x1x8x8xbf16> to vector<8x8xbf16>
    %14 = vector.shape_cast %11 : vector<8x8xbf16> to vector<1x1x8x8xbf16>
    tpu.vector_store %arg6[%c0_9, %c0_10, %c0_11, %c0_12], %14 {strides = array<i32>} : memref<1x4x8x8xbf16, #tpu.memory_space<vmem>>, vector<1x1x8x8xbf16>,
    %15 = vector.extract_strided_slice %4 {offsets = [0, 16], sizes = [8, 8], strides = [1, 1]} : vector<8x24xf32> to vector<8x8xf32>
    %16 = arith.truncf %15 : vector<8x8xf32> to vector<8x8xbf16>
    %c0_13 = arith.constant 0 : index
    %c0_14 = arith.constant 0 : index
    %c0_15 = arith.constant 0 : index
    %c0_16 = arith.constant 0 : index
    %17 = vector.load %arg7[%c0_13, %c0_14, %c0_15, %c0_16] : memref<1x4x8x8xbf16, #tpu.memory_space<vmem>>, vector<1x1x8x8xbf16>
    %18 = vector.shape_cast %17 : vector<1x1x8x8xbf16> to vector<8x8xbf16>
    %19 = vector.shape_cast %16 : vector<8x8xbf16> to vector<1x1x8x8xbf16>
    tpu.vector_store %arg7[%c0_13, %c0_14, %c0_15, %c0_16], %19 {strides = array<i32>} : memref<1x4x8x8xbf16, #tpu.memory_space<vmem>>, vector<1x1x8x8xbf16>,
    %c1 = arith.constant 1 : index
    %c0_17 = arith.constant 0 : index
    %c0_18 = arith.constant 0 : index
    %20 = vector.load %arg4[%c1, %c0_17, %c0_18] : memref<4x32x24xbf16, #tpu.memory_space<vmem>>, vector<1x32x24xbf16>
    %21 = vector.shape_cast %20 : vector<1x32x24xbf16> to vector<32x24xbf16>
    %cst_19 = arith.constant dense<0.000000e+00> : vector<8x24xf32>
    %22 = tpu.matmul %1, %21, %cst_19 {dimension_numbers = #tpu.dot_dimension_numbers<[1], [0], [0], [1], [0, 0, 1, 1], [], []>} : vector<8x32xbf16>, vector<32x24xbf16>, vector<8x24xf32> -> vector<8x24xf32>
    %23 = vector.extract_strided_slice %22 {offsets = [0, 0], sizes = [8, 8], strides = [1, 1]} : vector<8x24xf32> to vector<8x8xf32>
    %24 = arith.truncf %23 : vector<8x8xf32> to vector<8x8xbf16>
    %c0_20 = arith.constant 0 : index
    %c1_21 = arith.constant 1 : index
    %c0_22 = arith.constant 0 : index
    %c0_23 = arith.constant 0 : index
    %25 = vector.load %arg5[%c0_20, %c1_21, %c0_22, %c0_23] : memref<1x4x8x8xbf16, #tpu.memory_space<vmem>>, vector<1x1x8x8xbf16>
    %26 = vector.shape_cast %25 : vector<1x1x8x8xbf16> to vector<8x8xbf16>
    %27 = vector.shape_cast %24 : vector<8x8xbf16> to vector<1x1x8x8xbf16>
    tpu.vector_store %arg5[%c0_20, %c1_21, %c0_22, %c0_23], %27 {strides = array<i32>} : memref<1x4x8x8xbf16, #tpu.memory_space<vmem>>, vector<1x1x8x8xbf16>,
    %28 = vector.extract_strided_slice %22 {offsets = [0, 8], sizes = [8, 8], strides = [1, 1]} : vector<8x24xf32> to vector<8x8xf32>
    %29 = arith.truncf %28 : vector<8x8xf32> to vector<8x8xbf16>
    %c0_24 = arith.constant 0 : index
    %c1_25 = arith.constant 1 : index
    %c0_26 = arith.constant 0 : index
    %c0_27 = arith.constant 0 : index
    %30 = vector.load %arg6[%c0_24, %c1_25, %c0_26, %c0_27] : memref<1x4x8x8xbf16, #tpu.memory_space<vmem>>, vector<1x1x8x8xbf16>
    %31 = vector.shape_cast %30 : vector<1x1x8x8xbf16> to vector<8x8xbf16>
    %32 = vector.shape_cast %29 : vector<8x8xbf16> to vector<1x1x8x8xbf16>
    tpu.vector_store %arg6[%c0_24, %c1_25, %c0_26, %c0_27], %32 {strides = array<i32>} : memref<1x4x8x8xbf16, #tpu.memory_space<vmem>>, vector<1x1x8x8xbf16>,
    %33 = vector.extract_strided_slice %22 {offsets = [0, 16], sizes = [8, 8], strides = [1, 1]} : vector<8x24xf32> to vector<8x8xf32>
    %34 = arith.truncf %33 : vector<8x8xf32> to vector<8x8xbf16>
    %c0_28 = arith.constant 0 : index
    %c1_29 = arith.constant 1 : index
    %c0_30 = arith.constant 0 : index
    %c0_31 = arith.constant 0 : index
    %35 = vector.load %arg7[%c0_28, %c1_29, %c0_30, %c0_31] : memref<1x4x8x8xbf16, #tpu.memory_space<vmem>>, vector<1x1x8x8xbf16>
    %36 = vector.shape_cast %35 : vector<1x1x8x8xbf16> to vector<8x8xbf16>
    %37 = vector.shape_cast %34 : vector<8x8xbf16> to vector<1x1x8x8xbf16>
    tpu.vector_store %arg7[%c0_28, %c1_29, %c0_30, %c0_31], %37 {strides = array<i32>} : memref<1x4x8x8xbf16, #tpu.memory_space<vmem>>, vector<1x1x8x8xbf16>,
    %c2 = arith.constant 2 : index
    %c0_32 = arith.constant 0 : index
    %c0_33 = arith.constant 0 : index
    %38 = vector.load %arg4[%c2, %c0_32, %c0_33] : memref<4x32x24xbf16, #tpu.memory_space<vmem>>, vector<1x32x24xbf16>
    %39 = vector.shape_cast %38 : vector<1x32x24xbf16> to vector<32x24xbf16>
    %cst_34 = arith.constant dense<0.000000e+00> : vector<8x24xf32>
    %40 = tpu.matmul %1, %39, %cst_34 {dimension_numbers = #tpu.dot_dimension_numbers<[1], [0], [0], [1], [0, 0, 1, 1], [], []>} : vector<8x32xbf16>, vector<32x24xbf16>, vector<8x24xf32> -> vector<8x24xf32>
    %41 = vector.extract_strided_slice %40 {offsets = [0, 0], sizes = [8, 8], strides = [1, 1]} : vector<8x24xf32> to vector<8x8xf32>
    %42 = arith.truncf %41 : vector<8x8xf32> to vector<8x8xbf16>
    %c0_35 = arith.constant 0 : index
    %c2_36 = arith.constant 2 : index
    %c0_37 = arith.constant 0 : index
    %c0_38 = arith.constant 0 : index
    %43 = vector.load %arg5[%c0_35, %c2_36, %c0_37, %c0_38] : memref<1x4x8x8xbf16, #tpu.memory_space<vmem>>, vector<1x1x8x8xbf16>
    %44 = vector.shape_cast %43 : vector<1x1x8x8xbf16> to vector<8x8xbf16>
    %45 = vector.shape_cast %42 : vector<8x8xbf16> to vector<1x1x8x8xbf16>
    tpu.vector_store %arg5[%c0_35, %c2_36, %c0_37, %c0_38], %45 {strides = array<i32>} : memref<1x4x8x8xbf16, #tpu.memory_space<vmem>>, vector<1x1x8x8xbf16>,
    %46 = vector.extract_strided_slice %40 {offsets = [0, 8], sizes = [8, 8], strides = [1, 1]} : vector<8x24xf32> to vector<8x8xf32>
    %47 = arith.truncf %46 : vector<8x8xf32> to vector<8x8xbf16>
    %c0_39 = arith.constant 0 : index
    %c2_40 = arith.constant 2 : index
    %c0_41 = arith.constant 0 : index
    %c0_42 = arith.constant 0 : index
    %48 = vector.load %arg6[%c0_39, %c2_40, %c0_41, %c0_42] : memref<1x4x8x8xbf16, #tpu.memory_space<vmem>>, vector<1x1x8x8xbf16>
    %49 = vector.shape_cast %48 : vector<1x1x8x8xbf16> to vector<8x8xbf16>
    %50 = vector.shape_cast %47 : vector<8x8xbf16> to vector<1x1x8x8xbf16>
    tpu.vector_store %arg6[%c0_39, %c2_40, %c0_41, %c0_42], %50 {strides = array<i32>} : memref<1x4x8x8xbf16, #tpu.memory_space<vmem>>, vector<1x1x8x8xbf16>,
    %51 = vector.extract_strided_slice %40 {offsets = [0, 16], sizes = [8, 8], strides = [1, 1]} : vector<8x24xf32> to vector<8x8xf32>
    %52 = arith.truncf %51 : vector<8x8xf32> to vector<8x8xbf16>
    %c0_43 = arith.constant 0 : index
    %c2_44 = arith.constant 2 : index
    %c0_45 = arith.constant 0 : index
    %c0_46 = arith.constant 0 : index
    %53 = vector.load %arg7[%c0_43, %c2_44, %c0_45, %c0_46] : memref<1x4x8x8xbf16, #tpu.memory_space<vmem>>, vector<1x1x8x8xbf16>
    %54 = vector.shape_cast %53 : vector<1x1x8x8xbf16> to vector<8x8xbf16>
    %55 = vector.shape_cast %52 : vector<8x8xbf16> to vector<1x1x8x8xbf16>
    tpu.vector_store %arg7[%c0_43, %c2_44, %c0_45, %c0_46], %55 {strides = array<i32>} : memref<1x4x8x8xbf16, #tpu.memory_space<vmem>>, vector<1x1x8x8xbf16>,
    %c3 = arith.constant 3 : index
    %c0_47 = arith.constant 0 : index
    %c0_48 = arith.constant 0 : index
    %56 = vector.load %arg4[%c3, %c0_47, %c0_48] : memref<4x32x24xbf16, #tpu.memory_space<vmem>>, vector<1x32x24xbf16>
    %57 = vector.shape_cast %56 : vector<1x32x24xbf16> to vector<32x24xbf16>
    %cst_49 = arith.constant dense<0.000000e+00> : vector<8x24xf32>
    %58 = tpu.matmul %1, %57, %cst_49 {dimension_numbers = #tpu.dot_dimension_numbers<[1], [0], [0], [1], [0, 0, 1, 1], [], []>} : vector<8x32xbf16>, vector<32x24xbf16>, vector<8x24xf32> -> vector<8x24xf32>
    %59 = vector.extract_strided_slice %58 {offsets = [0, 0], sizes = [8, 8], strides = [1, 1]} : vector<8x24xf32> to vector<8x8xf32>
    %60 = arith.truncf %59 : vector<8x8xf32> to vector<8x8xbf16>
    %c0_50 = arith.constant 0 : index
    %c3_51 = arith.constant 3 : index
    %c0_52 = arith.constant 0 : index
    %c0_53 = arith.constant 0 : index
    %61 = vector.load %arg5[%c0_50, %c3_51, %c0_52, %c0_53] : memref<1x4x8x8xbf16, #tpu.memory_space<vmem>>, vector<1x1x8x8xbf16>
    %62 = vector.shape_cast %61 : vector<1x1x8x8xbf16> to vector<8x8xbf16>
    %63 = vector.shape_cast %60 : vector<8x8xbf16> to vector<1x1x8x8xbf16>
    tpu.vector_store %arg5[%c0_50, %c3_51, %c0_52, %c0_53], %63 {strides = array<i32>} : memref<1x4x8x8xbf16, #tpu.memory_space<vmem>>, vector<1x1x8x8xbf16>,
    %64 = vector.extract_strided_slice %58 {offsets = [0, 8], sizes = [8, 8], strides = [1, 1]} : vector<8x24xf32> to vector<8x8xf32>
    %65 = arith.truncf %64 : vector<8x8xf32> to vector<8x8xbf16>
    %c0_54 = arith.constant 0 : index
    %c3_55 = arith.constant 3 : index
    %c0_56 = arith.constant 0 : index
    %c0_57 = arith.constant 0 : index
    %66 = vector.load %arg6[%c0_54, %c3_55, %c0_56, %c0_57] : memref<1x4x8x8xbf16, #tpu.memory_space<vmem>>, vector<1x1x8x8xbf16>
    %67 = vector.shape_cast %66 : vector<1x1x8x8xbf16> to vector<8x8xbf16>
    %68 = vector.shape_cast %65 : vector<8x8xbf16> to vector<1x1x8x8xbf16>
    tpu.vector_store %arg6[%c0_54, %c3_55, %c0_56, %c0_57], %68 {strides = array<i32>} : memref<1x4x8x8xbf16, #tpu.memory_space<vmem>>, vector<1x1x8x8xbf16>,
    %69 = vector.extract_strided_slice %58 {offsets = [0, 16], sizes = [8, 8], strides = [1, 1]} : vector<8x24xf32> to vector<8x8xf32>
    %70 = arith.truncf %69 : vector<8x8xf32> to vector<8x8xbf16>
    %c0_58 = arith.constant 0 : index
    %c3_59 = arith.constant 3 : index
    %c0_60 = arith.constant 0 : index
    %c0_61 = arith.constant 0 : index
    %71 = vector.load %arg7[%c0_58, %c3_59, %c0_60, %c0_61] : memref<1x4x8x8xbf16, #tpu.memory_space<vmem>>, vector<1x1x8x8xbf16>
    %72 = vector.shape_cast %71 : vector<1x1x8x8xbf16> to vector<8x8xbf16>
    %73 = vector.shape_cast %70 : vector<8x8xbf16> to vector<1x1x8x8xbf16>
    tpu.vector_store %arg7[%c0_58, %c3_59, %c0_60, %c0_61], %73 {strides = array<i32>} : memref<1x4x8x8xbf16, #tpu.memory_space<vmem>>, vector<1x1x8x8xbf16>,
    return
  }
  func.func @transform_0(%arg0: i32, %arg1: i32, %arg2: i32) -> (i32, i32, i32) {
    %c0_i32 = arith.constant 0 : i32
    %c0_i32_0 = arith.constant 0 : i32
    return %arg1, %arg2, %c0_i32 : i32, i32, i32
  }
  func.func @transform_1(%arg0: i32, %arg1: i32, %arg2: i32) -> (i32, i32, i32) {
    %c0_i32 = arith.constant 0 : i32
    %c0_i32_0 = arith.constant 0 : i32
    %c0_i32_1 = arith.constant 0 : i32
    return %arg0, %c0_i32, %c0_i32_0 : i32, i32, i32
  }
  func.func @transform_2(%arg0: i32, %arg1: i32, %arg2: i32) -> (i32, i32, i32, i32) {
    %c0_i32 = arith.constant 0 : i32
    %c0_i32_0 = arith.constant 0 : i32
    return %arg1, %arg0, %arg2, %c0_i32 : i32, i32, i32, i32
  }
  func.func @transform_3(%arg0: i32, %arg1: i32, %arg2: i32) -> (i32, i32, i32, i32) {
    %c0_i32 = arith.constant 0 : i32
    %c0_i32_0 = arith.constant 0 : i32
    return %arg1, %arg0, %arg2, %c0_i32 : i32, i32, i32, i32
  }
  func.func @transform_4(%arg0: i32, %arg1: i32, %arg2: i32) -> (i32, i32, i32, i32) {
    %c0_i32 = arith.constant 0 : i32
    %c0_i32_0 = arith.constant 0 : i32
    return %arg1, %arg0, %arg2, %c0_i32 : i32, i32, i32, i32
  }
}

</mosaic_0001>

<llo_original>
// kernel: tpu_custom_call.1
$region0: #{tpu_custom_call.1}
  #allocation0 [shape = 'u32[]', space=smem, size = 0x4, offset = 0x4, fixed_abs, tag = 'smem constant byte address 0x4 - core index']
  #allocation1 [shape = 'u32[144,128]{1,0:T(1,128)}', space=vmem, size = 0x12000, scoped, tag = 'internal scratch']
  %s0 = inlined_call_operand.hbm [shape: bf16[2,32,32], index: 0, kind: input, shape index: {}]
  %s1 = inlined_call_operand.hbm [shape: bf16[4,32,24], index: 1, kind: input, shape index: {}]
  %s2 = inlined_call_operand.hbm [shape: bf16[2,4,32,8], index: 2, kind: output, shape index: {0}]
  %s3 = inlined_call_operand.hbm [shape: bf16[2,4,32,8], index: 3, kind: output, shape index: {1}]
  %s4 = inlined_call_operand.hbm [shape: bf16[2,4,32,8], index: 4, kind: output, shape index: {2}]
  %5 = xla_tuple %s2, %s3, %s4
  %s6 = sld [smem:[#allocation0]]
  $region65: #{tpu_custom_call.1} parent=0
    _
  %s8 = ssub.s32 1, %s6
  %s9 = scalar_select 0, %s8, %s6
  $region1: #{tpu_custom_call.1} parent=0
    #allocation2 [shape = 'u8[4096]{0}', space=vmem, size = 0x1000, scoped, tag = 'input window, operand 0']
    #allocation3 [shape = 's32[2]{0}', space=sflag, size = 0x8, scoped, tag = 'scoped memory for tpu_custom_call.1']
    #allocation4 [shape = 's32[2]{0}', space=sflag, size = 0x8, scoped, tag = 'scoped memory for tpu_custom_call.1']
    #allocation5 [shape = 'u8[32768]{0}', space=vmem, size = 0x8000, scoped, tag = 'input window, operand 1, single buffered']
    #allocation6 [shape = 's32[1]{0}', space=sflag, size = 0x4, scoped, tag = 'scoped memory for tpu_custom_call.1']
    #allocation7 [shape = 'u8[16384]{0}', space=vmem, size = 0x4000, scoped, tag = 'output window, operand 0']
    #allocation8 [shape = 'u8[16384]{0}', space=vmem, size = 0x4000, scoped, tag = 'output window, operand 1']
    #allocation9 [shape = 's32[2]{0}', space=sflag, size = 0x8, scoped, tag = 'scoped memory for tpu_custom_call.1']
    #allocation10 [shape = 'u8[16384]{0}', space=vmem, size = 0x4000, scoped, tag = 'output window, operand 2']
    %10 = vsyncpa [#allocation3], 0
    %s11 = scalar_lea.sflag [#allocation3], 1
    %12 = vsyncpa %s11, 0
    %13 = vsyncpa [#allocation6], 0
    %14 = vsyncpa [#allocation4], 0
    %s15 = scalar_lea.sflag [#allocation4], 1
    %16 = vsyncpa %s15, 0
    %17 = vsyncpa [#allocation9], 0
    %s18 = scalar_lea.sflag [#allocation9], 1
    %19 = vsyncpa %s18, 0
    loop: start=0, step=1, limit=10
    $region2: #{tpu_custom_call.1} parent=1 // loop_pre_header
      _
    $region3: #{tpu_custom_call.1} parent=1 // loop_header
      %s21 = sphi 0, %s25
      %p22 = scmp.ge.s32.totalorder %s21, 10
      %s28 = sphi 0, %s47
      %s29 = sphi 0, %s43
      %s30 = sphi 0, %s39
      %s31 = sphi 0, %s28
      %s32 = sphi 0, %s29
      %s33 = sphi 0, %s30
      %s34 = sphi 0, %s31
      %s35 = sphi 0, %s32
      %s36 = sphi 0, %s33
      %s52 = sphi 0, %s54
      %s55 = sphi 0, %s52
      %s56 = sphi 0, %s55
      %s72 = sphi 0, %s56
      %s78 = sphi 0, %s80
      %s81 = sphi 0, %s78
      %s82 = sphi 0, %s81
      %s98 = sphi 0, %s82
      %s108 = sphi 0, %s110
      %s111 = sphi 0, %s108
      %s112 = sphi 0, %s111
      %s128 = sphi 0, %s112
      %s138 = sphi 0, %s140
      %s141 = sphi 0, %s138
      %s142 = sphi 0, %s141
      %s158 = sphi 0, %s142
      %s168 = sphi 0, %s170
      %s171 = sphi 0, %s168
      %s172 = sphi 0, %s171
      %s188 = sphi 0, %s172
    $region4: #{tpu_custom_call.1} parent=1 // loop_header_branch
      %24 = sbr.rel (%p22) target = $region8
    $region5: #{tpu_custom_call.1} parent=1 // loop_body
      %s26 = ssub.s32 %s21, 1
      %s27 = ssub.s32 %s21, 2
      %s37 = sadd.s32 1, %s30
      %p38 = scmp.ge.s32.totalorder %s37, 4
      %s39 = scalar_select %p38, 0, %s37
      %s40 = sadd.s32 1, %s29
      %s41 = scalar_select %p38, %s40, %s29
      %p42 = scmp.ge.s32.totalorder %s41, 2
      %s43 = scalar_select %p42, 0, %s41
      %s44 = sadd.s32 1, %s28
      %s45 = scalar_select %p42, %s44, %s28
      %p46 = scmp.ge.s32.totalorder %s45, 1
      %s47 = scalar_select %p46, 0, %s45
      %s48 = ssub.s32 %s29, %s43
      %s49 = ssub.s32 %s30, %s39
      %s50 = sor.u32 %s48, %s49
      %p51 = scmp.eq.s32.totalorder %s50, 0
      %s53 = sadd.s32 %s52, 1
      %s54 = scalar_select %p51, %s52, %s53
      %p57 = pneg %p51
      %p58 = scmp.eq.s32.totalorder %s21, 7
      %p59 = por %p57, %p58
      %p60 = scmp.ne.s32.totalorder %s52, %s55
      %p61 = scmp.eq.s32.totalorder %s21, 0
      %p62 = por %p60, %p61
      %p63 = scmp.ne.s32.totalorder %s52, %s55
      %p64 = scmp.eq.s32.totalorder %s26, 7
      %p65 = por %p63, %p64
      %p66 = scmp.ne.s32.totalorder %s55, %s56
      %p67 = scmp.eq.s32.totalorder %s26, 0
      %p68 = por %p66, %p67
      %p69 = scmp.ne.s32.totalorder %s55, %s56
      %p70 = scmp.eq.s32.totalorder %s27, 7
      %p71 = por %p69, %p70
      %p73 = scmp.ne.s32.totalorder %s56, %s72
      %p74 = scmp.eq.s32.totalorder %s27, 0
      %p75 = por %p73, %p74
      %s76 = ssub.s32 %s28, %s47
      %p77 = scmp.eq.s32.totalorder %s76, 0
      %s79 = sadd.s32 %s78, 1
      %s80 = scalar_select %p77, %s78, %s79
      %p83 = pneg %p77
      %p84 = scmp.eq.s32.totalorder %s21, 7
      %p85 = por %p83, %p84
      %p86 = scmp.ne.s32.totalorder %s78, %s81
      %p87 = scmp.eq.s32.totalorder %s21, 0
      %p88 = por %p86, %p87
      %p89 = scmp.ne.s32.totalorder %s78, %s81
      %p90 = scmp.eq.s32.totalorder %s26, 7
      %p91 = por %p89, %p90
      %p92 = scmp.ne.s32.totalorder %s81, %s82
      %p93 = scmp.eq.s32.totalorder %s26, 0
      %p94 = por %p92, %p93
      %p95 = scmp.ne.s32.totalorder %s81, %s82
      %p96 = scmp.eq.s32.totalorder %s27, 7
      %p97 = por %p95, %p96
      %p99 = scmp.ne.s32.totalorder %s82, %s98
      %p100 = scmp.eq.s32.totalorder %s27, 0
      %p101 = por %p99, %p100
      %s102 = ssub.s32 %s29, %s43
      %s103 = ssub.s32 %s28, %s47
      %s104 = sor.u32 %s102, %s103
      %s105 = ssub.s32 %s30, %s39
      %s106 = sor.u32 %s104, %s105
      %p107 = scmp.eq.s32.totalorder %s106, 0
      %s109 = sadd.s32 %s108, 1
      %s110 = scalar_select %p107, %s108, %s109
      %p113 = pneg %p107
      %p114 = scmp.eq.s32.totalorder %s21, 7
      %p115 = por %p113, %p114
      %p116 = scmp.ne.s32.totalorder %s108, %s111
      %p117 = scmp.eq.s32.totalorder %s21, 0
      %p118 = por %p116, %p117
      %p119 = scmp.ne.s32.totalorder %s108, %s111
      %p120 = scmp.eq.s32.totalorder %s26, 7
      %p121 = por %p119, %p120
      %p122 = scmp.ne.s32.totalorder %s111, %s112
      %p123 = scmp.eq.s32.totalorder %s26, 0
      %p124 = por %p122, %p123
      %p125 = scmp.ne.s32.totalorder %s111, %s112
      %p126 = scmp.eq.s32.totalorder %s27, 7
      %p127 = por %p125, %p126
      %p129 = scmp.ne.s32.totalorder %s112, %s128
      %p130 = scmp.eq.s32.totalorder %s27, 0
      %p131 = por %p129, %p130
      %s132 = ssub.s32 %s29, %s43
      %s133 = ssub.s32 %s28, %s47
      %s134 = sor.u32 %s132, %s133
      %s135 = ssub.s32 %s30, %s39
      %s136 = sor.u32 %s134, %s135
      %p137 = scmp.eq.s32.totalorder %s136, 0
      %s139 = sadd.s32 %s138, 1
      %s140 = scalar_select %p137, %s138, %s139
      %p143 = pneg %p137
      %p144 = scmp.eq.s32.totalorder %s21, 7
      %p145 = por %p143, %p144
      %p146 = scmp.ne.s32.totalorder %s138, %s141
      %p147 = scmp.eq.s32.totalorder %s21, 0
      %p148 = por %p146, %p147
      %p149 = scmp.ne.s32.totalorder %s138, %s141
      %p150 = scmp.eq.s32.totalorder %s26, 7
      %p151 = por %p149, %p150
      %p152 = scmp.ne.s32.totalorder %s141, %s142
      %p153 = scmp.eq.s32.totalorder %s26, 0
      %p154 = por %p152, %p153
      %p155 = scmp.ne.s32.totalorder %s141, %s142
      %p156 = scmp.eq.s32.totalorder %s27, 7
      %p157 = por %p155, %p156
      %p159 = scmp.ne.s32.totalorder %s142, %s158
      %p160 = scmp.eq.s32.totalorder %s27, 0
      %p161 = por %p159, %p160
      %s162 = ssub.s32 %s29, %s43
      %s163 = ssub.s32 %s28, %s47
      %s164 = sor.u32 %s162, %s163
      %s165 = ssub.s32 %s30, %s39
      %s166 = sor.u32 %s164, %s165
      %p167 = scmp.eq.s32.totalorder %s166, 0
      %s169 = sadd.s32 %s168, 1
      %s170 = scalar_select %p167, %s168, %s169
      %p173 = pneg %p167
      %p174 = scmp.eq.s32.totalorder %s21, 7
      %p175 = por %p173, %p174
      %p176 = scmp.ne.s32.totalorder %s168, %s171
      %p177 = scmp.eq.s32.totalorder %s21, 0
      %p178 = por %p176, %p177
      %p179 = scmp.ne.s32.totalorder %s168, %s171
      %p180 = scmp.eq.s32.totalorder %s26, 7
      %p181 = por %p179, %p180
      %p182 = scmp.ne.s32.totalorder %s171, %s172
      %p183 = scmp.eq.s32.totalorder %s26, 0
      %p184 = por %p182, %p183
      %p185 = scmp.ne.s32.totalorder %s171, %s172
      %p186 = scmp.eq.s32.totalorder %s27, 7
      %p187 = por %p185, %p186
      %p189 = scmp.ne.s32.totalorder %s172, %s188
      %p190 = scmp.eq.s32.totalorder %s27, 0
      %p191 = por %p189, %p190
      %p192 = scmp.le.s32.totalorder 1, %s21
      %p193 = scmp.lt.s32.totalorder %s21, 9
      %p194 = pnand %p192, %p193
      %p195 = pneg %p194
      // Predicated region
      $region9: #{tpu_custom_call.1} parent=5 // pred_check
        _
      $region10: #{tpu_custom_call.1} parent=5 // pred_check_branch
        %197 = sbr.rel (%p194) target = $region12
      $region11: #{tpu_custom_call.1} parent=5 // pred_region
        %s198 = ssub.s32 %s21, 1
        // Predicated region
        $region13: #{tpu_custom_call.1} parent=11 // pred_check
          %p199 = pneg %p94
        $region14: #{tpu_custom_call.1} parent=11 // pred_check_branch
          %201 = sbr.rel (%p199) target = $region16
        $region15: #{tpu_custom_call.1} parent=11 // pred_region
          %s202 = smul.u32 4, %s31
          %s204 = ssub.s32 1024, 1024
          %205 = vsyncadd [#allocation6], %s204
          %s206 = smul.addr %s202, 4
          %s207 = smul.addr %s206, 64
          %s208 = scalar_lea.hbm %s1, %s207
          %s209 = sshll.u32 [#allocation5], 4
          %s210 = int_to_ptr.vmem [resolvable:$true] %s209
          %215 = dma.hbm_to_vmem [thread:$0]  %s208, 1024, %s210, [#allocation6], 64, 64, 4
        $region16: #{tpu_custom_call.1} parent=11 // pred_fallthru
          _
      $region12: #{tpu_custom_call.1} parent=5 // pred_fallthru
        _
      %p216 = scmp.lt.s32.totalorder %s21, 8
      // Predicated region
      $region17: #{tpu_custom_call.1} parent=5 // pred_check
        %p217 = pneg %p216
      $region18: #{tpu_custom_call.1} parent=5 // pred_check_branch
        %219 = sbr.rel (%p217) target = $region20
      $region19: #{tpu_custom_call.1} parent=5 // pred_region
        // Predicated region
        $region21: #{tpu_custom_call.1} parent=19 // pred_check
          %p220 = pneg %p62
        $region22: #{tpu_custom_call.1} parent=19 // pred_check_branch
          %222 = sbr.rel (%p220) target = $region24
        $region23: #{tpu_custom_call.1} parent=19 // pred_region
          %s223 = sand.u32 %s52, 1
          %s224 = scalar_lea.sflag [#allocation3], %s223
          %s225 = sand.u32 %s52, 1
          %s226 = smul.addr %s225, 4
          %s227 = scalar_lea.vmem [#allocation2], %s226
          %s229 = ssub.s32 64, 64
          %230 = vsyncadd %s224, %s229
          %s231 = smul.addr %s29, 4
          %s232 = sadd.s32 %s30, %s231
          %s233 = smul.addr %s232, 64
          %s234 = scalar_lea.hbm %s0, %s233
          %s236 = sshll.u32 %s227, 4
          %s237 = int_to_ptr.vmem [resolvable:$true] %s236
          %239 = dma.hbm_to_vmem [thread:$0]  %s234, 64, %s237, %s224
        $region24: #{tpu_custom_call.1} parent=19 // pred_fallthru
          _
      $region20: #{tpu_custom_call.1} parent=5 // pred_fallthru
        _
      %p240 = scmp.le.s32.totalorder 1, %s21
      %p241 = scmp.lt.s32.totalorder %s21, 9
      %p242 = pnand %p240, %p241
      %p243 = pneg %p242
      // Predicated region
      $region25: #{tpu_custom_call.1} parent=5 // pred_check
        _
      $region26: #{tpu_custom_call.1} parent=5 // pred_check_branch
        %245 = sbr.rel (%p242) target = $region28
      $region27: #{tpu_custom_call.1} parent=5 // pred_region
        %s246 = ssub.s32 %s21, 1
        %s247 = sand.u32 %s55, 1
        %s248 = scalar_lea.sflag [#allocation3], %s247
        %s249 = sand.u32 %s55, 1
        %s250 = smul.addr %s249, 4
        %s251 = scalar_lea.vmem [#allocation2], %s250
        // Predicated region
        $region29: #{tpu_custom_call.1} parent=27 // pred_check
          %p252 = pneg %p68
        $region30: #{tpu_custom_call.1} parent=27 // pred_check_branch
          %254 = sbr.rel (%p252) target = $region32
        $region31: #{tpu_custom_call.1} parent=27 // pred_region
          %255 = dma.done %s248, 64
        $region32: #{tpu_custom_call.1} parent=27 // pred_fallthru
          _
        // Predicated region
        $region33: #{tpu_custom_call.1} parent=27 // pred_check
          %p256 = pneg %p94
        $region34: #{tpu_custom_call.1} parent=27 // pred_check_branch
          %258 = sbr.rel (%p256) target = $region36
        $region35: #{tpu_custom_call.1} parent=27 // pred_region
          %259 = dma.done [#allocation6], 1024
        $region36: #{tpu_custom_call.1} parent=27 // pred_fallthru
          _
        %s260 = sand.u32 %s55, 1
        %s261 = scalar_lea.sflag [#allocation3], %s260
        %s262 = sand.u32 %s55, 1
        %s263 = smul.addr %s262, 4
        %s264 = scalar_lea.vmem [#allocation2], %s263
        %p265 = pneg %p68
        %p266 = pneg %p65
        %p267 = pneg %p94
        %p268 = pneg %p91
        %p269 = pneg %p124
        %p270 = pneg %p121
        %s271 = sand.u32 %s111, 1
        %s272 = scalar_lea.sflag [#allocation4], %s271
        %s273 = sand.u32 %s111, 1
        %s274 = smul.addr %s273, 16
        %s275 = scalar_lea.vmem [#allocation7], %s274
        %p276 = pneg %p154
        %p277 = pneg %p151
        %s278 = sand.u32 %s26, 1
        %s279 = scalar_lea.sflag [#allocation9], %s278
        %s280 = sand.u32 %s141, 1
        %s281 = smul.addr %s280, 16
        %s282 = scalar_lea.vmem [#allocation8], %s281
        %p283 = pneg %p184
        %p284 = pneg %p181
        %s285 = sand.u32 %s26, 1
        %s286 = scalar_lea.sflag [#allocation9], %s285
        %s287 = sand.u32 %s171, 1
        %s288 = smul.addr %s287, 16
        %s289 = scalar_lea.vmem [#allocation10], %s288
        %s290 = smul.u32 4, %s31
        %s291 = smul.u32 4, %s31
        %s292 = smul.u32 4, %s31
        %s293 = smul.u32 4, %s31
        %v295 = vld [vmem:[%s251] sm:$0xf]
        %v296 = vld [vmem:[#allocation5] sm:$0xf]
        %v297 = vld [vmem:[#allocation5 + $0x4] sm:$0xf]
        %v298 = vld [vmem:[#allocation5 + $0x8] sm:$0xf]
        %v299 = vld [vmem:[#allocation5 + $0xc] sm:$0xf]
        %v304 = vunpack.c.l.b16 %v296
        %v305 = vunpack.c.l.b16 %v297
        %v306 = vunpack.c.l.b16 %v298
        %v307 = vunpack.c.l.b16 %v299
        %v308 = vpack.c.b16 %v305, %v304
        %v309 = vpack.c.b16 %v307, %v306
        %vm312 = vcmask 261120
        %v314 = vsel %vm312, %v295, 0
        %316 = vmatprep.subr.bf16.mxu0 0
        %317 = vmatpush1.bf16.msra.mxu0 %v308
        %318 = vmatprep.subr.bf16.mxu0 0
        %319 = vmatpush1.bf16.msra.mxu0 %v309
        %320 = vmatprep.subr.bf16.mxu0 0
        %321 = vmatpush1.bf16.msra.mxu0 0
        %322 = vmatprep.subr.bf16.mxu0 0
        %323 = vmatpush1.bf16.msra.mxu0 0
        %324 = vmatprep.subr.bf16.mxu0 0
        %325 = vmatpush1.bf16.msra.mxu0 0
        %326 = vmatprep.subr.bf16.mxu0 0
        %327 = vmatpush1.bf16.msra.mxu0 0
        %328 = vmatprep.subr.bf16.mxu0 0
        %329 = vmatpush1.bf16.msra.mxu0 0
        %330 = vmatprep.subr.bf16.mxu0 0
        %331 = vmatpush1.bf16.msra.mxu0 0
        %332 = vmatprep.subr.bf16.mxu0 0
        %333 = vmatpush1.bf16.msra.mxu0 0
        %334 = vmatprep.subr.bf16.mxu0 0
        %335 = vmatpush1.bf16.msra.mxu0 0
        %336 = vmatprep.subr.bf16.mxu0 0
        %337 = vmatpush1.bf16.msra.mxu0 0
        %338 = vmatprep.subr.bf16.mxu0 0
        %339 = vmatpush1.bf16.msra.mxu0 0
        %340 = vmatprep.subr.bf16.mxu0 0
        %341 = vmatpush1.bf16.msra.mxu0 0
        %342 = vmatprep.subr.bf16.mxu0 0
        %343 = vmatpush1.bf16.msra.mxu0 0
        %344 = vmatprep.subr.bf16.mxu0 0
        %345 = vmatpush1.bf16.msra.mxu0 0
        %346 = vmatprep.subr.bf16.mxu0 0
        %347 = vmatpush1.bf16.msra.mxu0 0
        %348 = vmatprep.mubr.bf16.mxu0 0
        %349 = vmatmul.mubr.bf16.gmra.mrb[0].mxu0 %v314
        %v350 = vpop.f32.mrb[0].mxu0
        %v351 = vadd.f32 0.0, %v350
        %v352 = vpop.f32.mrb[0].mxu0
        %v353 = vpop.f32.mrb[0].mxu0
        %v354 = vpop.f32.mrb[0].mxu0
        %355 = vdwg.mxu0
        %v356 = vpack.c.bf16 %v351, %v351
        %vm357 = vcmask 60416
        %358 = vst.msk [vmem:[%s275] sm:$0xf] %vm357, %v356
        %v360 = vunpack.c.l.b16 %v356
        %v361 = vpack.c.b16 %v360, %v360
        %362 = vrot.lane.b32.xlu0 %v361, 120
        %v363 = vpop.permute.xlu0 %362
        %365 = vst.msk [vmem:[%s282] sm:$0xf] %vm357, %v363
        %366 = vrot.lane.b32.xlu0 %v361, 112
        %v367 = vpop.permute.xlu0 %366
        %369 = vst.msk [vmem:[%s289] sm:$0xf] %vm357, %v367
        %s370 = scalar_lea.vmem [#allocation5], 16
        %v371 = vld [vmem:[%s370] sm:$0xf]
        %v372 = vld [vmem:[%s370 + $0x4] sm:$0xf]
        %v373 = vld [vmem:[%s370 + $0x8] sm:$0xf]
        %v374 = vld [vmem:[%s370 + $0xc] sm:$0xf]
        %v379 = vunpack.c.l.b16 %v371
        %v380 = vunpack.c.l.b16 %v372
        %v381 = vunpack.c.l.b16 %v373
        %v382 = vunpack.c.l.b16 %v374
        %v383 = vpack.c.b16 %v380, %v379
        %v384 = vpack.c.b16 %v382, %v381
        %387 = vmatprep.subr.bf16.mxu0 0
        %388 = vmatpush1.bf16.msra.mxu0 %v383
        %389 = vmatprep.subr.bf16.mxu0 0
        %390 = vmatpush1.bf16.msra.mxu0 %v384
        %391 = vmatprep.subr.bf16.mxu0 0
        %392 = vmatpush1.bf16.msra.mxu0 0
        %393 = vmatprep.subr.bf16.mxu0 0
        %394 = vmatpush1.bf16.msra.mxu0 0
        %395 = vmatprep.subr.bf16.mxu0 0
        %396 = vmatpush1.bf16.msra.mxu0 0
        %397 = vmatprep.subr.bf16.mxu0 0
        %398 = vmatpush1.bf16.msra.mxu0 0
        %399 = vmatprep.subr.bf16.mxu0 0
        %400 = vmatpush1.bf16.msra.mxu0 0
        %401 = vmatprep.subr.bf16.mxu0 0
        %402 = vmatpush1.bf16.msra.mxu0 0
        %403 = vmatprep.subr.bf16.mxu0 0
        %404 = vmatpush1.bf16.msra.mxu0 0
        %405 = vmatprep.subr.bf16.mxu0 0
        %406 = vmatpush1.bf16.msra.mxu0 0
        %407 = vmatprep.subr.bf16.mxu0 0
        %408 = vmatpush1.bf16.msra.mxu0 0
        %409 = vmatprep.subr.bf16.mxu0 0
        %410 = vmatpush1.bf16.msra.mxu0 0
        %411 = vmatprep.subr.bf16.mxu0 0
        %412 = vmatpush1.bf16.msra.mxu0 0
        %413 = vmatprep.subr.bf16.mxu0 0
        %414 = vmatpush1.bf16.msra.mxu0 0
        %415 = vmatprep.subr.bf16.mxu0 0
        %416 = vmatpush1.bf16.msra.mxu0 0
        %417 = vmatprep.subr.bf16.mxu0 0
        %418 = vmatpush1.bf16.msra.mxu0 0
        %419 = vmatprep.mubr.bf16.mxu0 0
        %420 = vmatmul.mubr.bf16.gmra.mrb[0].mxu0 %v314
        %v421 = vpop.f32.mrb[0].mxu0
        %v422 = vadd.f32 0.0, %v421
        %v423 = vpop.f32.mrb[0].mxu0
        %v424 = vpop.f32.mrb[0].mxu0
        %v425 = vpop.f32.mrb[0].mxu0
        %426 = vdwg.mxu0
        %v427 = vpack.c.bf16 %v422, %v422
        %s428 = scalar_lea.vmem %s275, 4 [#allocation7]
        %429 = vst.msk [vmem:[%s428] sm:$0xf] %vm357, %v427
        %v431 = vunpack.c.l.b16 %v427
        %v432 = vpack.c.b16 %v431, %v431
        %433 = vrot.lane.b32.xlu0 %v432, 120
        %v434 = vpop.permute.xlu0 %433
        %s436 = scalar_lea.vmem %s282, 4 [#allocation8]
        %437 = vst.msk [vmem:[%s436] sm:$0xf] %vm357, %v434
        %438 = vrot.lane.b32.xlu0 %v432, 112
        %v439 = vpop.permute.xlu0 %438
        %s441 = scalar_lea.vmem %s289, 4 [#allocation10]
        %442 = vst.msk [vmem:[%s441] sm:$0xf] %vm357, %v439
        %s443 = scalar_lea.vmem [#allocation5], 32
        %v444 = vld [vmem:[%s443] sm:$0xf]
        %v445 = vld [vmem:[%s443 + $0x4] sm:$0xf]
        %v446 = vld [vmem:[%s443 + $0x8] sm:$0xf]
        %v447 = vld [vmem:[%s443 + $0xc] sm:$0xf]
        %v452 = vunpack.c.l.b16 %v444
        %v453 = vunpack.c.l.b16 %v445
        %v454 = vunpack.c.l.b16 %v446
        %v455 = vunpack.c.l.b16 %v447
        %v456 = vpack.c.b16 %v453, %v452
        %v457 = vpack.c.b16 %v455, %v454
        %460 = vmatprep.subr.bf16.mxu0 0
        %461 = vmatpush1.bf16.msra.mxu0 %v456
        %462 = vmatprep.subr.bf16.mxu0 0
        %463 = vmatpush1.bf16.msra.mxu0 %v457
        %464 = vmatprep.subr.bf16.mxu0 0
        %465 = vmatpush1.bf16.msra.mxu0 0
        %466 = vmatprep.subr.bf16.mxu0 0
        %467 = vmatpush1.bf16.msra.mxu0 0
        %468 = vmatprep.subr.bf16.mxu0 0
        %469 = vmatpush1.bf16.msra.mxu0 0
        %470 = vmatprep.subr.bf16.mxu0 0
        %471 = vmatpush1.bf16.msra.mxu0 0
        %472 = vmatprep.subr.bf16.mxu0 0
        %473 = vmatpush1.bf16.msra.mxu0 0
        %474 = vmatprep.subr.bf16.mxu0 0
        %475 = vmatpush1.bf16.msra.mxu0 0
        %476 = vmatprep.subr.bf16.mxu0 0
        %477 = vmatpush1.bf16.msra.mxu0 0
        %478 = vmatprep.subr.bf16.mxu0 0
        %479 = vmatpush1.bf16.msra.mxu0 0
        %480 = vmatprep.subr.bf16.mxu0 0
        %481 = vmatpush1.bf16.msra.mxu0 0
        %482 = vmatprep.subr.bf16.mxu0 0
        %483 = vmatpush1.bf16.msra.mxu0 0
        %484 = vmatprep.subr.bf16.mxu0 0
        %485 = vmatpush1.bf16.msra.mxu0 0
        %486 = vmatprep.subr.bf16.mxu0 0
        %487 = vmatpush1.bf16.msra.mxu0 0
        %488 = vmatprep.subr.bf16.mxu0 0
        %489 = vmatpush1.bf16.msra.mxu0 0
        %490 = vmatprep.subr.bf16.mxu0 0
        %491 = vmatpush1.bf16.msra.mxu0 0
        %492 = vmatprep.mubr.bf16.mxu0 0
        %493 = vmatmul.mubr.bf16.gmra.mrb[0].mxu0 %v314
        %v494 = vpop.f32.mrb[0].mxu0
        %v495 = vadd.f32 0.0, %v494
        %v496 = vpop.f32.mrb[0].mxu0
        %v497 = vpop.f32.mrb[0].mxu0
        %v498 = vpop.f32.mrb[0].mxu0
        %499 = vdwg.mxu0
        %v500 = vpack.c.bf16 %v495, %v495
        %s501 = scalar_lea.vmem %s275, 8 [#allocation7]
        %502 = vst.msk [vmem:[%s501] sm:$0xf] %vm357, %v500
        %v504 = vunpack.c.l.b16 %v500
        %v505 = vpack.c.b16 %v504, %v504
        %506 = vrot.lane.b32.xlu0 %v505, 120
        %v507 = vpop.permute.xlu0 %506
        %s509 = scalar_lea.vmem %s282, 8 [#allocation8]
        %510 = vst.msk [vmem:[%s509] sm:$0xf] %vm357, %v507
        %511 = vrot.lane.b32.xlu0 %v505, 112
        %v512 = vpop.permute.xlu0 %511
        %s514 = scalar_lea.vmem %s289, 8 [#allocation10]
        %515 = vst.msk [vmem:[%s514] sm:$0xf] %vm357, %v512
        %s516 = scalar_lea.vmem [#allocation5], 48
        %v517 = vld [vmem:[%s516] sm:$0xf]
        %v518 = vld [vmem:[%s516 + $0x4] sm:$0xf]
        %v519 = vld [vmem:[%s516 + $0x8] sm:$0xf]
        %v520 = vld [vmem:[%s516 + $0xc] sm:$0xf]
        %v525 = vunpack.c.l.b16 %v517
        %v526 = vunpack.c.l.b16 %v518
        %v527 = vunpack.c.l.b16 %v519
        %v528 = vunpack.c.l.b16 %v520
        %v529 = vpack.c.b16 %v526, %v525
        %v530 = vpack.c.b16 %v528, %v527
        %533 = vmatprep.subr.bf16.mxu0 0
        %534 = vmatpush1.bf16.msra.mxu0 %v529
        %535 = vmatprep.subr.bf16.mxu0 0
        %536 = vmatpush1.bf16.msra.mxu0 %v530
        %537 = vmatprep.subr.bf16.mxu0 0
        %538 = vmatpush1.bf16.msra.mxu0 0
        %539 = vmatprep.subr.bf16.mxu0 0
        %540 = vmatpush1.bf16.msra.mxu0 0
        %541 = vmatprep.subr.bf16.mxu0 0
        %542 = vmatpush1.bf16.msra.mxu0 0
        %543 = vmatprep.subr.bf16.mxu0 0
        %544 = vmatpush1.bf16.msra.mxu0 0
        %545 = vmatprep.subr.bf16.mxu0 0
        %546 = vmatpush1.bf16.msra.mxu0 0
        %547 = vmatprep.subr.bf16.mxu0 0
        %548 = vmatpush1.bf16.msra.mxu0 0
        %549 = vmatprep.subr.bf16.mxu0 0
        %550 = vmatpush1.bf16.msra.mxu0 0
        %551 = vmatprep.subr.bf16.mxu0 0
        %552 = vmatpush1.bf16.msra.mxu0 0
        %553 = vmatprep.subr.bf16.mxu0 0
        %554 = vmatpush1.bf16.msra.mxu0 0
        %555 = vmatprep.subr.bf16.mxu0 0
        %556 = vmatpush1.bf16.msra.mxu0 0
        %557 = vmatprep.subr.bf16.mxu0 0
        %558 = vmatpush1.bf16.msra.mxu0 0
        %559 = vmatprep.subr.bf16.mxu0 0
        %560 = vmatpush1.bf16.msra.mxu0 0
        %561 = vmatprep.subr.bf16.mxu0 0
        %562 = vmatpush1.bf16.msra.mxu0 0
        %563 = vmatprep.subr.bf16.mxu0 0
        %564 = vmatpush1.bf16.msra.mxu0 0
        %565 = vmatprep.mubr.bf16.mxu0 0
        %566 = vmatmul.mubr.bf16.gmra.mrb[0].mxu0 %v314
        %v567 = vpop.f32.mrb[0].mxu0
        %v568 = vadd.f32 0.0, %v567
        %v569 = vpop.f32.mrb[0].mxu0
        %v570 = vpop.f32.mrb[0].mxu0
        %v571 = vpop.f32.mrb[0].mxu0
        %572 = vdwg.mxu0
        %v573 = vpack.c.bf16 %v568, %v568
        %s574 = scalar_lea.vmem %s275, 12 [#allocation7]
        %575 = vst.msk [vmem:[%s574] sm:$0xf] %vm357, %v573
        %v577 = vunpack.c.l.b16 %v573
        %v578 = vpack.c.b16 %v577, %v577
        %579 = vrot.lane.b32.xlu0 %v578, 120
        %v580 = vpop.permute.xlu0 %579
        %s582 = scalar_lea.vmem %s282, 12 [#allocation8]
        %583 = vst.msk [vmem:[%s582] sm:$0xf] %vm357, %v580
        %584 = vrot.lane.b32.xlu0 %v578, 112
        %v585 = vpop.permute.xlu0 %584
        %s587 = scalar_lea.vmem %s289, 12 [#allocation10]
        %588 = vst.msk [vmem:[%s587] sm:$0xf] %vm357, %v585
        %s589 = sand.u32 %s111, 1
        %s590 = scalar_lea.sflag [#allocation4], %s589
        %s591 = sand.u32 %s111, 1
        %s592 = smul.addr %s591, 16
        %s593 = scalar_lea.vmem [#allocation7], %s592
        %s594 = sand.u32 %s26, 1
        %s595 = scalar_lea.sflag [#allocation9], %s594
        %s596 = sand.u32 %s141, 1
        %s597 = smul.addr %s596, 16
        %s598 = scalar_lea.vmem [#allocation8], %s597
        %s599 = sand.u32 %s26, 1
        %s600 = scalar_lea.sflag [#allocation9], %s599
        %s601 = sand.u32 %s171, 1
        %s602 = smul.addr %s601, 16
        %s603 = scalar_lea.vmem [#allocation10], %s602
        // Predicated region
        $region37: #{tpu_custom_call.1} parent=27 // pred_check
          %p604 = pneg %p121
        $region38: #{tpu_custom_call.1} parent=27 // pred_check_branch
          %606 = sbr.rel (%p604) target = $region40
        $region39: #{tpu_custom_call.1} parent=27 // pred_region
          %s607 = smul.u32 4, %s31
          %s609 = ssub.s32 256, 256
          %610 = vsyncadd %s590, %s609
          %s611 = smul.addr %s607, 4
          %s612 = sadd.s32 %s33, %s611
          %s613 = smul.addr %s32, 16
          %s614 = sadd.s32 %s612, %s613
          %s615 = smul.addr %s614, 64
          %s616 = scalar_lea.hbm %s2, %s615
          %s617 = sshll.u32 %s593, 4
          %s618 = int_to_ptr.vmem [resolvable:$true] %s617
          %623 = dma.vmem_to_hbm [thread:$0]  %s618, 256, %s616, %s590, 64, 256, 4
        $region40: #{tpu_custom_call.1} parent=27 // pred_fallthru
          _
        // Predicated region
        $region41: #{tpu_custom_call.1} parent=27 // pred_check
          %p624 = pneg %p151
        $region42: #{tpu_custom_call.1} parent=27 // pred_check_branch
          %626 = sbr.rel (%p624) target = $region44
        $region43: #{tpu_custom_call.1} parent=27 // pred_region
          %s627 = smul.u32 4, %s31
          %s629 = ssub.s32 256, 256
          %630 = vsyncadd %s595, %s629
          %s631 = smul.addr %s627, 4
          %s632 = sadd.s32 %s33, %s631
          %s633 = smul.addr %s32, 16
          %s634 = sadd.s32 %s632, %s633
          %s635 = smul.addr %s634, 64
          %s636 = scalar_lea.hbm %s3, %s635
          %s637 = sshll.u32 %s598, 4
          %s638 = int_to_ptr.vmem [resolvable:$true] %s637
          %643 = dma.vmem_to_hbm [thread:$0]  %s638, 256, %s636, %s595, 64, 256, 4
        $region44: #{tpu_custom_call.1} parent=27 // pred_fallthru
          _
        // Predicated region
        $region45: #{tpu_custom_call.1} parent=27 // pred_check
          %p644 = pneg %p181
        $region46: #{tpu_custom_call.1} parent=27 // pred_check_branch
          %646 = sbr.rel (%p644) target = $region48
        $region47: #{tpu_custom_call.1} parent=27 // pred_region
          %s647 = smul.u32 4, %s31
          %s649 = ssub.s32 256, 256
          %650 = vsyncadd %s600, %s649
          %s651 = smul.addr %s647, 4
          %s652 = sadd.s32 %s33, %s651
          %s653 = smul.addr %s32, 16
          %s654 = sadd.s32 %s652, %s653
          %s655 = smul.addr %s654, 64
          %s656 = scalar_lea.hbm %s4, %s655
          %s657 = sshll.u32 %s603, 4
          %s658 = int_to_ptr.vmem [resolvable:$true] %s657
          %663 = dma.vmem_to_hbm [thread:$0]  %s658, 256, %s656, %s600, 64, 256, 4
        $region48: #{tpu_custom_call.1} parent=27 // pred_fallthru
          _
      $region28: #{tpu_custom_call.1} parent=5 // pred_fallthru
        _
      %p664 = scmp.le.s32.totalorder 2, %s21
      // Predicated region
      $region49: #{tpu_custom_call.1} parent=5 // pred_check
        %p665 = pneg %p664
      $region50: #{tpu_custom_call.1} parent=5 // pred_check_branch
        %667 = sbr.rel (%p665) target = $region52
      $region51: #{tpu_custom_call.1} parent=5 // pred_region
        %s668 = ssub.s32 %s21, 2
        // Predicated region
        $region53: #{tpu_custom_call.1} parent=51 // pred_check
          %p669 = pneg %p127
        $region54: #{tpu_custom_call.1} parent=51 // pred_check_branch
          %671 = sbr.rel (%p669) target = $region56
        $region55: #{tpu_custom_call.1} parent=51 // pred_region
          %s672 = sand.u32 %s112, 1
          %s673 = scalar_lea.sflag [#allocation4], %s672
          %s674 = sand.u32 %s112, 1
          %s675 = smul.addr %s674, 16
          %s676 = scalar_lea.vmem [#allocation7], %s675
          %677 = dma.done %s673, 256
        $region56: #{tpu_custom_call.1} parent=51 // pred_fallthru
          _
        // Predicated region
        $region57: #{tpu_custom_call.1} parent=51 // pred_check
          %p678 = pneg %p157
        $region58: #{tpu_custom_call.1} parent=51 // pred_check_branch
          %680 = sbr.rel (%p678) target = $region60
        $region59: #{tpu_custom_call.1} parent=51 // pred_region
          %s681 = sand.u32 %s27, 1
          %s682 = scalar_lea.sflag [#allocation9], %s681
          %s683 = sand.u32 %s142, 1
          %s684 = smul.addr %s683, 16
          %s685 = scalar_lea.vmem [#allocation8], %s684
          %686 = dma.done %s682, 256
        $region60: #{tpu_custom_call.1} parent=51 // pred_fallthru
          _
        // Predicated region
        $region61: #{tpu_custom_call.1} parent=51 // pred_check
          %p687 = pneg %p187
        $region62: #{tpu_custom_call.1} parent=51 // pred_check_branch
          %689 = sbr.rel (%p687) target = $region64
        $region63: #{tpu_custom_call.1} parent=51 // pred_region
          %s690 = sand.u32 %s27, 1
          %s691 = scalar_lea.sflag [#allocation9], %s690
          %s692 = sand.u32 %s172, 1
          %s693 = smul.addr %s692, 16
          %s694 = scalar_lea.vmem [#allocation10], %s693
          %695 = dma.done %s691, 256
        $region64: #{tpu_custom_call.1} parent=51 // pred_fallthru
          _
      $region52: #{tpu_custom_call.1} parent=5 // pred_fallthru
        _
    $region6: #{tpu_custom_call.1} parent=1 // loop_footer
      %s25 = sadd.s32 1, %s21
    $region7: #{tpu_custom_call.1} parent=1 // loop_footer_branch
      %20 = sbr.rel target = $region3
    $region8: #{tpu_custom_call.1} parent=1 // loop_exit
      _
    %696 = vsyncpa [#allocation3], 1
    %s697 = scalar_lea.sflag [#allocation3], 1
    %698 = vsyncpa %s697, 1
    %699 = vsyncpa [#allocation6], 1
    %700 = vsyncpa [#allocation4], 1
    %s701 = scalar_lea.sflag [#allocation4], 1
    %702 = vsyncpa %s701, 1
    %703 = vsyncpa [#allocation9], 1
    %s704 = scalar_lea.sflag [#allocation9], 1
    %705 = vsyncpa %s704, 1

</llo_original>
